<compile_context>
chip_gen: v6e
topology: v6e:2x2x1
jax: 0.10.0
libtpu: 0.0.40
codegen_flags: <defaults>
</compile_context>

<pallas_src>
import math
import functools

import jax
import jax.numpy as jnp
import numpy as np
from jax.experimental import pallas as pl
from jax.experimental.pallas import tpu as pltpu


def _round_up(x, m):
    return ((x + m - 1) // m) * m


def _temporal_encoding_kernel(t_ref, omega_ref, bias_ref, o_ref, *,
                              div_term, k, d, tm):
    # t_ref:     (TM, K)      K packed timestamps per output row
    # omega_ref: (1, K*D)     omega tiled K times (resident across grid steps)
    # bias_ref:  (1, K*D)     bias  tiled K times (resident across grid steps)
    # o_ref:     (TM, K*D)    lane-dense output tile (K*D == 128 when packed)
    t = t_ref[...]                                            # (TM, K)

    # Expand each packed timestamp across its D lanes, then assemble one
    # 128-lane-wide operand.  k is small and static, so this unrolls.
    cols = [jnp.broadcast_to(t[:, j:j + 1], (tm, d)) for j in range(k)]
    t_exp = cols[0] if k == 1 else jnp.concatenate(cols, axis=-1)  # (TM, K*D)

    # Full-width VPU FMA + EUP cos + VPU scale, single full-width store.
    enc = t_exp * omega_ref[...] + bias_ref[...]              # (TM, K*D)
    o_ref[...] = (div_term * jnp.cos(enc)).astype(o_ref.dtype)


def temporal_encoding(timestamps, omega, bias, *, row_tile=512,
                      out_dtype=jnp.float32):
    """timestamps: (B, L); omega, bias: (D,) -> (B, L, D) in out_dtype."""
    B, L = timestamps.shape
    D = int(omega.shape[0])
    div_term = math.sqrt(1.0 / D)
    N = B * L

    # Pack K timestamps per output row so the output last dim is 128 lanes.
    # Fallback K = 1 (still correct, possibly masked stores) otherwise.
    if D < 128 and 128 % D == 0:
        K = 128 // D
    else:
        K = 1

    rows = -(-N // K)                               # ceil(N / K)
    tm = max(8, min(row_tile, _round_up(rows, 8)))  # big slab, not > needed
    tm = _round_up(tm, 8)
    rows_padded = _round_up(rows, tm)

    flat = timestamps.reshape(N).astype(jnp.float32)
    pad = rows_padded * K - N
    if pad:
        flat = jnp.pad(flat, (0, pad))              # zero-pad ragged tail
    t2d = flat.reshape(rows_padded, K)

    # Pre-tile omega / bias to width K*D so the kernel's FMA is lane-dense.
    omega2d = jnp.tile(omega.reshape(1, D).astype(jnp.float32), (1, K))
    bias2d = jnp.tile(bias.reshape(1, D).astype(jnp.float32), (1, K))

    kernel = functools.partial(_temporal_encoding_kernel,
                               div_term=div_term, k=K, d=D, tm=tm)

    out = pl.pallas_call(
        kernel,
        out_shape=jax.ShapeDtypeStruct((rows_padded, K * D), out_dtype),
        grid_spec=pltpu.PrefetchScalarGridSpec(
            num_scalar_prefetch=0,
            grid=(rows_padded // tm,),
            in_specs=[
                pl.BlockSpec((tm, K), lambda i: (i, 0)),      # packed timestamps
                pl.BlockSpec((1, K * D), lambda i: (0, 0)),   # omega (resident)
                pl.BlockSpec((1, K * D), lambda i: (0, 0)),   # bias  (resident)
            ],
            out_specs=pl.BlockSpec((tm, K * D), lambda i: (i, 0)),
        ),
        compiler_params=pltpu.CompilerParams(
            dimension_semantics=("parallel",),      # megacore-shardable axis
        ),
    )(t2d, omega2d, bias2d)

    # (rows_padded, K*D) -> (rows_padded*K, D): row r*K+j holds timestamp r*K+j.
    out = out.reshape(rows_padded * K, D)[:N]
    return out.reshape(B, L, D)


def temporal_encoding_ref(timestamps, omega, bias):
    D = omega.shape[0]
    div_term = math.sqrt(1.0 / D)
    enc = timestamps[..., None] * omega + bias
    return div_term * jnp.cos(enc)


if __name__ == "__main__":
    # Deterministic parameter init mirroring the PyTorch __init__:
    #   omega = 1 / 10 ** linspace(0, 9, D), bias = zeros(D)
    key = jax.random.PRNGKey(0)

    # Primary small-shape check: batch=2, seq=8, embed_dim=32.
    B, L, D = 2, 8, 32
    omega = jnp.asarray(1.0 / 10.0 ** np.linspace(0.0, 9.0, D), dtype=jnp.float32)
    bias = jnp.zeros((D,), dtype=jnp.float32)
    k0, k1 = jax.random.split(key)
    timestamps = jax.random.uniform(k0, (B, L), dtype=jnp.float32) * 100.0

    out = jax.block_until_ready(temporal_encoding(timestamps, omega, bias))
    ref = temporal_encoding_ref(timestamps, omega, bias)
    np.testing.assert_allclose(np.asarray(out), np.asarray(ref),
                               rtol=1e-5, atol=1e-5)

    # Ragged-shape check (exercises padding path; B*L not a multiple of 8*K).
    Br, Lr = 3, 7
    ts_r = jax.random.uniform(k1, (Br, Lr), dtype=jnp.float32) * 100.0
    out_r = jax.block_until_ready(temporal_encoding(ts_r, omega, bias))
    ref_r = temporal_encoding_ref(ts_r, omega, bias)
    np.testing.assert_allclose(np.asarray(out_r), np.asarray(ref_r),
                               rtol=1e-5, atol=1e-5)

    print("KERNEL_OK")
</pallas_src>

<mosaic_0001>
module attributes {stable_mosaic.version = 11 : i64} {
  func.func @_temporal_encoding_kernel(%arg0: i32, %arg1: memref<8x4xf32, #tpu.memory_space<vmem>>, %arg2: memref<1x128xf32, #tpu.memory_space<vmem>>, %arg3: memref<1x128xf32, #tpu.memory_space<vmem>>, %arg4: memref<8x128xf32, #tpu.memory_space<vmem>>) attributes {dimension_semantics = [#tpu.dimension_semantics<parallel>], iteration_bounds = array<i64: 1>, scalar_prefetch = 0 : i64, scratch_operands = 0 : i64, tpu.core_type = #tpu.core_type<tc>, window_params = [{transform_indices = @transform_0, window_bounds = array<i64: 8, 4>}, {pipeline_mode = #tpu.pipeline_mode<synchronous>, transform_indices = @transform_1, window_bounds = array<i64: 1, 128>}, {pipeline_mode = #tpu.pipeline_mode<synchronous>, transform_indices = @transform_2, window_bounds = array<i64: 1, 128>}, {transform_indices = @transform_3, window_bounds = array<i64: 8, 128>}]} {
    %c0 = arith.constant 0 : index
    %c0_0 = arith.constant 0 : index
    %0 = vector.load %arg1[%c0, %c0_0] : memref<8x4xf32, #tpu.memory_space<vmem>>, vector<8x4xf32>
    %1 = vector.extract_strided_slice %0 {offsets = [0, 0], sizes = [8, 1], strides = [1, 1]} : vector<8x4xf32> to vector<8x1xf32>
    %2 = vector.shape_cast %1 : vector<8x1xf32> to vector<8x1xf32>
    %3 = vector.broadcast %2 : vector<8x1xf32> to vector<8x32xf32>
    %4 = vector.extract_strided_slice %0 {offsets = [0, 1], sizes = [8, 1], strides = [1, 1]} : vector<8x4xf32> to vector<8x1xf32>
    %5 = vector.shape_cast %4 : vector<8x1xf32> to vector<8x1xf32>
    %6 = vector.broadcast %5 : vector<8x1xf32> to vector<8x32xf32>
    %7 = vector.extract_strided_slice %0 {offsets = [0, 2], sizes = [8, 1], strides = [1, 1]} : vector<8x4xf32> to vector<8x1xf32>
    %8 = vector.shape_cast %7 : vector<8x1xf32> to vector<8x1xf32>
    %9 = vector.broadcast %8 : vector<8x1xf32> to vector<8x32xf32>
    %10 = vector.extract_strided_slice %0 {offsets = [0, 3], sizes = [8, 1], strides = [1, 1]} : vector<8x4xf32> to vector<8x1xf32>
    %11 = vector.shape_cast %10 : vector<8x1xf32> to vector<8x1xf32>
    %12 = vector.broadcast %11 : vector<8x1xf32> to vector<8x32xf32>
    %13 = tpu.concatenate %3, %6, %9, %12 in 1 : vector<8x32xf32>, vector<8x32xf32>, vector<8x32xf32>, vector<8x32xf32> -> vector<8x128xf32>
    %c0_1 = arith.constant 0 : index
    %c0_2 = arith.constant 0 : index
    %14 = vector.load %arg2[%c0_1, %c0_2] : memref<1x128xf32, #tpu.memory_space<vmem>>, vector<1x128xf32>
    %15 = vector.broadcast %14 : vector<1x128xf32> to vector<8x128xf32>
    %16 = arith.mulf %13, %15 : vector<8x128xf32>
    %c0_3 = arith.constant 0 : index
    %c0_4 = arith.constant 0 : index
    %17 = vector.load %arg3[%c0_3, %c0_4] : memref<1x128xf32, #tpu.memory_space<vmem>>, vector<1x128xf32>
    %18 = vector.broadcast %17 : vector<1x128xf32> to vector<8x128xf32>
    %19 = arith.addf %16, %18 : vector<8x128xf32>
    %20 = math.cos %19 : vector<8x128xf32>
    %cst = arith.constant 0.176776692 : f32
    %21 = vector.broadcast %cst : f32 to vector<8x128xf32>
    %22 = arith.mulf %21, %20 : vector<8x128xf32>
    %c0_5 = arith.constant 0 : index
    %c0_6 = arith.constant 0 : index
    %23 = vector.load %arg4[%c0_5, %c0_6] : memref<8x128xf32, #tpu.memory_space<vmem>>, vector<8x128xf32>
    tpu.vector_store %arg4[%c0_5, %c0_6], %22 {strides = array<i32>} : memref<8x128xf32, #tpu.memory_space<vmem>>, vector<8x128xf32>,
    return
  }
  func.func @transform_0(%arg0: i32) -> (i32, i32) {
    %c0_i32 = arith.constant 0 : i32
    %c0_i32_0 = arith.constant 0 : i32
    return %arg0, %c0_i32 : i32, i32
  }
  func.func @transform_1(%arg0: i32) -> (i32, i32) {
    %c0_i32 = arith.constant 0 : i32
    %c0_i32_0 = arith.constant 0 : i32
    %c0_i32_1 = arith.constant 0 : i32
    return %c0_i32, %c0_i32_0 : i32, i32
  }
  func.func @transform_2(%arg0: i32) -> (i32, i32) {
    %c0_i32 = arith.constant 0 : i32
    %c0_i32_0 = arith.constant 0 : i32
    %c0_i32_1 = arith.constant 0 : i32
    return %c0_i32, %c0_i32_0 : i32, i32
  }
  func.func @transform_3(%arg0: i32) -> (i32, i32) {
    %c0_i32 = arith.constant 0 : i32
    %c0_i32_0 = arith.constant 0 : i32
    return %arg0, %c0_i32 : i32, i32
  }
}

</mosaic_0001>

<llo_original>
// kernel: tpu_custom_call.1
$region0: #{tpu_custom_call.1}
  #allocation0 [shape = 'u32[]', space=smem, size = 0x4, offset = 0x4, fixed_abs, tag = 'smem constant byte address 0x4 - core index']
  #allocation1 [shape = 'u32[144,128]{1,0:T(1,128)}', space=vmem, size = 0x12000, scoped, tag = 'internal scratch']
  %s0 = inlined_call_operand.vmem [shape: f32[8,4], index: 0, kind: input, shape index: {}]
  %s1 = inlined_call_operand.vmem [shape: f32[1,128], index: 1, kind: input, shape index: {}]
  %s2 = inlined_call_operand.vmem [shape: f32[1,128], index: 2, kind: input, shape index: {}]
  %s3 = inlined_call_operand.hbm [shape: f32[8,128], index: 3, kind: output, shape index: {}]
  %s4 = sld [smem:[#allocation0]]
  $region22: #{tpu_custom_call.1} parent=0
    _
  %s6 = ssub.s32 1, %s4
  %s7 = scalar_select 0, %s6, %s4
  $region1: #{tpu_custom_call.1} parent=0
    #allocation2 [shape = 'u8[4096]{0}', space=vmem, size = 0x1000, scoped, tag = 'output window, operand 0, single buffered']
    #allocation3 [shape = 's32[1]{0}', space=sflag, size = 0x4, scoped, tag = 'scoped memory for tpu_custom_call.1']
    %8 = vsyncpa [#allocation3], 0
    // Predicated region
    $region2: #{tpu_custom_call.1} parent=1 // pred_check
      _
    $region3: #{tpu_custom_call.1} parent=1 // pred_check_branch
      %10 = sbr.rel (0) target = $region5
    $region4: #{tpu_custom_call.1} parent=1 // pred_region
      _
    $region5: #{tpu_custom_call.1} parent=1 // pred_fallthru
      _
    // Predicated region
    $region6: #{tpu_custom_call.1} parent=1 // pred_check
      _
    $region7: #{tpu_custom_call.1} parent=1 // pred_check_branch
      %12 = sbr.rel (0) target = $region9
    $region8: #{tpu_custom_call.1} parent=1 // pred_region
      _
    $region9: #{tpu_custom_call.1} parent=1 // pred_fallthru
      _
    // Predicated region
    $region10: #{tpu_custom_call.1} parent=1 // pred_check
      _
    $region11: #{tpu_custom_call.1} parent=1 // pred_check_branch
      %14 = sbr.rel (0) target = $region13
    $region12: #{tpu_custom_call.1} parent=1 // pred_region
      _
    $region13: #{tpu_custom_call.1} parent=1 // pred_fallthru
      _
    %v15 = vld [vmem:[%s0] sm:$0xff]
    %17 = vset.pattern.permute.xlu0 0
    %18 = vperm.xlu0 %17, %v15
    %v19 = vpop.permute.xlu0 %18
    %21 = vset.pattern.permute.xlu0 1
    %22 = vperm.xlu0 %21, %v15
    %v23 = vpop.permute.xlu0 %22
    %25 = vset.pattern.permute.xlu0 2
    %26 = vperm.xlu0 %25, %v15
    %v27 = vpop.permute.xlu0 %26
    %29 = vset.pattern.permute.xlu0 3
    %30 = vperm.xlu0 %29, %v15
    %v31 = vpop.permute.xlu0 %30
    %vm33 = vcmask 261120
    %v34 = vsel %vm33, %v19, %v23
    %vm35 = vcmask 523264
    %v36 = vsel %vm35, %v34, %v27
    %vm37 = vcmask 785408
    %v38 = vsel %vm37, %v36, %v31
    %v39 = vld [vmem:[%s1] sm:$0x1]
    %v41 = vlaneseq
    %v42 = vshrl.u32 %v41, 7
    %v43 = vsub.s32 0, %v42
    %v44 = vrot.slane %v39, %v43
    %v46 = vmul.f32 %v38, %v44
    %v47 = vld [vmem:[%s2] sm:$0x1]
    %v49 = vlaneseq
    %v50 = vshrl.u32 %v49, 7
    %v51 = vsub.s32 0, %v50
    %v52 = vrot.slane %v47, %v51
    %v54 = vadd.f32 %v46, %v52
    %v55 = vand.u32 2147483647, %v54
    %vm56 = vcmp.le.f32.partialorder %v55, 0.7853982
    %vm57 = vcmp.lt.s32.totalorder %v54, 0
    %v58 = vand.u32 %v54, 2139095040
    %v59 = vshrl.u32 %v58, 23
    %v60 = vsub.s32 %v59, 127
    %v61 = vand.u32 2147483647, %v54
    %v62 = vand.u32 %v61, 8388607
    %v63 = vor.u32 %v62, 8388608
    %v64 = vsub.s32 0, %v63
    %v65 = vadd.s32 %v60, 1
    %vm66 = vcmp.gt.s32.totalorder %v65, 0
    %v67 = vsel %vm66, %v65, 0
    %v68 = vshrl.u32 %v67, 5
    %v69 = vand.u32 %v67, 31
    %v70 = vsub.s32 32, %v69
    %v71 = vshrl.u32 683565275, %v70
    %v72 = vshll.u32 683565275, %v69
    %v73 = vshrl.u32 2475754826, %v70
    %v74 = vor.u32 %v72, %v73
    %v75 = vshll.u32 2475754826, %v69
    %v76 = vshrl.u32 2131351028, %v70
    %v77 = vor.u32 %v75, %v76
    %v78 = vshll.u32 2131351028, %v69
    %v79 = vshrl.u32 2102212464, %v70
    %v80 = vor.u32 %v78, %v79
    %v81 = vshll.u32 2102212464, %v69
    %v82 = vshrl.u32 920167782, %v70
    %v83 = vor.u32 %v81, %v82
    %v84 = vshll.u32 920167782, %v69
    %v85 = vshrl.u32 1326507024, %v70
    %v86 = vor.u32 %v84, %v85
    %vm87 = vcmp.lt.s32.totalorder %v68, 1
    %vm88 = vcmp.lt.s32.totalorder %v68, 2
    %vm89 = vcmp.lt.s32.totalorder %v68, 3
    %vm90 = vcmp.lt.s32.totalorder %v68, 4
    %v91 = vsel %vm87, %v71, %v74
    %v92 = vsel %vm90, %v80, 2102212464
    %v93 = vsel %vm89, %v77, %v92
    %v94 = vsel %vm88, %v91, %v93
    %v95 = vsel %vm87, %v74, %v77
    %v96 = vsel %vm90, %v83, 920167782
    %v97 = vsel %vm89, %v80, %v96
    %v98 = vsel %vm88, %v95, %v97
    %v99 = vsel %vm87, %v77, %v80
    %v100 = vsel %vm90, %v86, 1326507024
    %v101 = vsel %vm89, %v83, %v100
    %v102 = vsel %vm88, %v99, %v101
    %v103 = vshll.u32 %v63, 8
    %v104 = vmul.u32.u64.compose %v103, %v102
    %v105 = vextract.low.u32 %v104
    %v106 = vextract.high.u32 %v104
    %v107 = vmul.u32.u64.compose %v103, %v98
    %v108 = vextract.low.u32 %v107
    %v109 = vextract.high.u32 %v107
    %v110 = vmul.u32 %v103, %v94
    %v111 = vadd.s32 %v106, %v108
    %vm112 = vc.u32 %v106, %v108
    %v113 = vadd.s32 %v109, 1
    %v114 = vsel %vm112, %v113, %v109
    %v115 = vadd.s32 %v110, %v114
    %v116 = vadd.s32 %v115, 536870912
    %v117 = vshrl.u32 %v116, 30
    %v118 = vshll.u32 %v117, 30
    %v119 = vsub.s32 %v115, %v118
    %vm120 = vcmp.lt.s32.totalorder %v119, 0
    %v121 = vsub.s32 0, %v119
    %v122 = vsel %vm120, %v121, %v119
    %v123 = vclz %v122
    %v124 = vsub.s32 %v123, 2
    %vm125 = vcmp.gt.s32.totalorder 0, %v124
    %v126 = vsel %vm125, 0, %v124
    %v127 = vsub.s32 32, %v126
    %v128 = vshll.u32 %v119, %v126
    %v129 = vshrl.u32 %v111, %v127
    %v130 = vor.u32 %v128, %v129
    %v131 = vsub.s32 4294967266, %v126
    %v132 = vadd.s32 %v131, 127
    %v133 = vshll.u32 %v132, 23
    %v134 = vor.u32 4788187, %v133
    %v135 = vand.u32 2147483647, %v134
    %v137 = vcvt.s32.f32 %v130
    %v138 = vmul.f32 %v137, %v135
    %v139 = vxor.u32 %v138, 2147483648
    %v140 = vsel %vm57, %v139, %v138
    %v141 = vsub.s32 4, %v117
    %v142 = vsel %vm57, %v141, %v117
    %v143 = vsel %vm56, %v54, %v140
    %v144 = vsel %vm56, 0, %v142
    %v145 = vcosq.f32.pop %v143
    %v146 = vsinq.f32.pop %v143
    %vm147 = vweird.f32 %v54
    %v148 = vand.u32 %v144, 3
    %vm149 = vcmp.lt.s32.totalorder %v148, 2
    %vm150 = vcmp.eq.s32.totalorder %v148, 0
    %v151 = vxor.u32 %v146, 2147483648
    %v152 = vsel %vm150, %v145, %v151
    %vm153 = vcmp.eq.s32.totalorder %v148, 2
    %v154 = vxor.u32 %v145, 2147483648
    %v155 = vsel %vm153, %v154, %v146
    %v156 = vsel %vm149, %v152, %v155
    %v157 = vsel %vm147, nan, %v156
    %v158 = vmul.f32 %v157, 0.17677669
    %159 = vst [vmem:[#allocation2] sm:$0xff] %v158
    // Predicated region
    $region14: #{tpu_custom_call.1} parent=1 // pred_check
      _
    $region15: #{tpu_custom_call.1} parent=1 // pred_check_branch
      %161 = sbr.rel (0) target = $region17
    $region16: #{tpu_custom_call.1} parent=1 // pred_region
      %s163 = ssub.s32 128, 128
      %164 = vsyncadd [#allocation3], %s163
      %s166 = sshll.u32 [#allocation2], 4
      %s167 = int_to_ptr.vmem [resolvable:$true] %s166
      %169 = dma.vmem_to_hbm [thread:$0]  %s167, 128, %s3, [#allocation3]
    $region17: #{tpu_custom_call.1} parent=1 // pred_fallthru
      _
    // Predicated region
    $region18: #{tpu_custom_call.1} parent=1 // pred_check
      _
    $region19: #{tpu_custom_call.1} parent=1 // pred_check_branch
      %171 = sbr.rel (0) target = $region21
    $region20: #{tpu_custom_call.1} parent=1 // pred_region
      %172 = dma.done [#allocation3], 128
    $region21: #{tpu_custom_call.1} parent=1 // pred_fallthru
      _
    %173 = vsyncpa [#allocation3], 1

</llo_original>
